<compile_context>
chip_gen: v7x
topology: tpu7x:2x2x1
jax: 0.10.0
libtpu: 0.0.40
codegen_flags: <defaults>
</compile_context>

<pallas_src>
import jax
import jax.numpy as jnp
from jax.experimental import pallas as pl
from jax.experimental.pallas import tpu as pltpu


def _gated_scale_kernel(g_ref, x_ref, o_ref):
    """g_ref: (TC, 1) f32, x_ref/o_ref: (TC, TS).  Pure VPU broadcast-multiply."""
    o_ref[...] = (x_ref[...] * g_ref[...]).astype(o_ref.dtype)


def _pick_tile(total, unit, cap):
    """Largest multiple of `unit` that divides `total` and is <= cap; else `total`.

    Returning `total` (the full array dim) is always a legal block size.
    """
    if total % unit != 0 or total <= cap:
        return total
    best = None
    cand = unit
    while cand <= cap:
        if total % cand == 0:
            best = cand
        cand += unit
    return best if best is not None else total


def _vmem_capacity_bytes():
    """Physical VMEM per TensorCore; conservative v7x fallback if query fails."""
    try:
        return int(pltpu.get_tpu_info().vmem_capacity_bytes)
    except Exception:
        return 64 * 1024 * 1024


def gated_conditioned_activation(x_ncdhw, y, w, bias, field_sizes):
    """x_ncdhw: (B, C, D, H, W); y: (B, cond_dim); w: (F, cond_dim); bias: (F,)."""
    B, C = x_ncdhw.shape[0], x_ncdhw.shape[1]
    spatial = x_ncdhw.shape[2:]
    S = 1
    for d in spatial:
        S *= d
    F, _ = w.shape
    assert len(field_sizes) == F and sum(field_sizes) == C

    # --- Hoisted gate computation (tiny (B,F) matmul + sigmoid, exact) -----------
    # TODO(synk): the (B, F) Linear+sigmoid and the ragged per-field -> per-channel
    # gate repeat are plain jnp in the wrapper; the HBM-bandwidth-bound broadcast
    # multiply is what lives in the Pallas kernel.
    reps = jnp.asarray(field_sizes, dtype=jnp.int32)
    gates_f = jax.nn.sigmoid(y.astype(jnp.float32) @ w.astype(jnp.float32).T
                             + bias.astype(jnp.float32))                 # (B, F) f32
    gates_c = jnp.repeat(gates_f, reps, axis=1, total_repeat_length=C)   # (B, C) f32
    # Keep gates in f32 (do not quantize the sigmoid); the kernel multiply upcasts.
    gates_2d = gates_c.reshape(B * C, 1)                                 # (BC, 1) f32

    # --- Native-layout view of x: fold (B, C) and flatten spatial (free reshape) --
    BC = B * C
    x_2d = x_ncdhw.reshape(BC, S)                                        # (BC, S)

    # --- Tile selection: TS first (contiguous axis), generation-aware budget ------
    itemsize = jnp.dtype(x_2d.dtype).itemsize
    sublane_unit = max(8, 32 // itemsize)          # 8 for f32, 16 for bf16, 32 for i8

    vmem_phys = _vmem_capacity_bytes()
    if vmem_phys <= 80 * 1024 * 1024:
        # v7x-class: 64 MiB physical VMEM.  6 MiB tiles -> ~24 MiB double-buffered.
        tile_budget = 6 * 1024 * 1024
        vmem_limit = 40 * 1024 * 1024
    else:
        # v5e / v6e: 128 MiB physical.  4 MiB tiles, scoped limit raised explicitly.
        tile_budget = 4 * 1024 * 1024
        vmem_limit = 48 * 1024 * 1024

    # Lane axis first: make TS as large as possible (ideally TS = S) while leaving
    # room for at least one sublane-unit row block inside the tile budget.
    ts_cap = max(128, tile_budget // (sublane_unit * itemsize))
    TS = _pick_tile(S, 128, ts_cap)
    # Then size the sublane axis to fill the remaining per-tile budget.
    tc_cap = max(sublane_unit, tile_budget // (TS * itemsize))
    TC = _pick_tile(BC, sublane_unit, tc_cap)

    grid = (pl.cdiv(BC, TC), pl.cdiv(S, TS))

    out_2d = pl.pallas_call(
        _gated_scale_kernel,
        grid=grid,
        in_specs=[
            # Gate column for this C-tile; constant across the S axis.
            pl.BlockSpec((TC, 1), lambda ci, si: (ci, 0)),
            # Streaming x tile (lane-dense, long contiguous HBM bursts).
            pl.BlockSpec((TC, TS), lambda ci, si: (ci, si)),
        ],
        out_specs=pl.BlockSpec((TC, TS), lambda ci, si: (ci, si)),
        out_shape=jax.ShapeDtypeStruct((BC, S), x_2d.dtype),
        compiler_params=pltpu.CompilerParams(
            dimension_semantics=("parallel", "parallel"),
            vmem_limit_bytes=vmem_limit),
    )(gates_2d, x_2d)

    # Free reshape back to (B, C, D, H, W) — no transpose needed.
    return out_2d.reshape((B, C) + tuple(spatial))


def _reference(x_ncdhw, y, w, bias, field_sizes):
    """Pure-JAX reference matching the PyTorch module."""
    gates = jax.nn.sigmoid(y @ w.T + bias)                                      # (B, F)
    reps = jnp.asarray(field_sizes, dtype=jnp.int32)
    g_ch = jnp.repeat(gates, reps, axis=1,
                      total_repeat_length=x_ncdhw.shape[1])                     # (B, C)
    return x_ncdhw * g_ch[:, :, None, None, None]


if __name__ == "__main__":
    # Synthetic field structure: 8 fields of size 16 (e.g. regular reps) -> C = 128.
    B = 2
    num_fields = 8
    field_size = 16
    C = num_fields * field_size
    D = 8                      # 3D voxel grid D x D x D -> S = 512
    cond_dim = 32
    field_sizes = [field_size] * num_fields

    key = jax.random.PRNGKey(0)
    k1, k2, k3, k4 = jax.random.split(key, 4)
    x = jax.random.normal(k1, (B, C, D, D, D), dtype=jnp.float32)
    y = jax.random.normal(k2, (B, cond_dim), dtype=jnp.float32)
    # Deterministic Linear(cond_dim, num_fields) params (PyTorch-style uniform init).
    bound = 1.0 / (cond_dim ** 0.5)
    w = jax.random.uniform(k3, (num_fields, cond_dim), jnp.float32, -bound, bound)
    bias = jax.random.uniform(k4, (num_fields,), jnp.float32, -bound, bound)

    out = gated_conditioned_activation(x, y, w, bias, field_sizes)
    out = jax.block_until_ready(out)

    ref = _reference(x, y, w, bias, field_sizes)
    assert out.shape == x.shape
    assert jnp.allclose(out, ref, atol=1e-5, rtol=1e-5)
    print("KERNEL_OK")
</pallas_src>

<mosaic_0001>
module attributes {stable_mosaic.version = 11 : i64} {
  func.func @_gated_scale_kernel(%arg0: i32, %arg1: i32, %arg2: memref<256x1xf32, #tpu.memory_space<vmem>>, %arg3: memref<256x512xf32, #tpu.memory_space<vmem>>, %arg4: memref<256x512xf32, #tpu.memory_space<vmem>>) attributes {dimension_semantics = [#tpu.dimension_semantics<parallel>, #tpu.dimension_semantics<parallel>], iteration_bounds = array<i64: 1, 1>, scalar_prefetch = 0 : i64, scratch_operands = 0 : i64, tpu.core_type = #tpu.core_type<tc>, window_params = [{transform_indices = @transform_0, window_bounds = array<i64: 256, 1>}, {transform_indices = @transform_1, window_bounds = array<i64: 256, 512>}, {transform_indices = @transform_2, window_bounds = array<i64: 256, 512>}]} {
    %c0 = arith.constant 0 : index
    %c0_0 = arith.constant 0 : index
    %0 = vector.load %arg3[%c0, %c0_0] : memref<256x512xf32, #tpu.memory_space<vmem>>, vector<256x512xf32>
    %c0_1 = arith.constant 0 : index
    %c0_2 = arith.constant 0 : index
    %1 = vector.load %arg2[%c0_1, %c0_2] : memref<256x1xf32, #tpu.memory_space<vmem>>, vector<256x1xf32>
    %2 = vector.broadcast %1 : vector<256x1xf32> to vector<256x512xf32>
    %3 = arith.mulf %0, %2 : vector<256x512xf32>
    %c0_3 = arith.constant 0 : index
    %c0_4 = arith.constant 0 : index
    %4 = vector.load %arg4[%c0_3, %c0_4] : memref<256x512xf32, #tpu.memory_space<vmem>>, vector<256x512xf32>
    tpu.vector_store %arg4[%c0_3, %c0_4], %3 {strides = array<i32>} : memref<256x512xf32, #tpu.memory_space<vmem>>, vector<256x512xf32>,
    return
  }
  func.func @transform_0(%arg0: i32, %arg1: i32) -> (i32, i32) {
    %c0_i32 = arith.constant 0 : i32
    %c0_i32_0 = arith.constant 0 : i32
    return %arg0, %c0_i32 : i32, i32
  }
  func.func @transform_1(%arg0: i32, %arg1: i32) -> (i32, i32) {
    %c0_i32 = arith.constant 0 : i32
    return %arg0, %arg1 : i32, i32
  }
  func.func @transform_2(%arg0: i32, %arg1: i32) -> (i32, i32) {
    %c0_i32 = arith.constant 0 : i32
    return %arg0, %arg1 : i32, i32
  }
}

</mosaic_0001>

<llo_original>
// kernel: tpu_custom_call.1
$region0: #{tpu_custom_call.1}
  #allocation0 [shape = 'u32[]', space=smem, size = 0x4, offset = 0x4, fixed_abs, tag = 'smem constant byte address 0x4 - core index']
  #allocation1 [shape = 'u32[144,128]{1,0:T(1,128)}', space=vmem, size = 0x12000, scoped, tag = 'internal scratch']
  %s0 = inlined_call_operand.vmem [shape: f32[256,1], index: 0, kind: input, shape index: {}]
  %s1 = inlined_call_operand.hbm [shape: f32[256,512], index: 1, kind: input, shape index: {}]
  %s2 = inlined_call_operand.hbm [shape: f32[256,512], index: 2, kind: output, shape index: {}]
  %s3 = sld [smem:[#allocation0]]
  $region22: #{tpu_custom_call.1} parent=0
    _
  %s5 = ssub.s32 1, %s3
  %s6 = scalar_select 0, %s5, %s3
  $region1: #{tpu_custom_call.1} parent=0
    #allocation2 [shape = 'u8[524288]{0}', space=vmem, size = 0x80000, scoped, tag = 'input window, operand 1, single buffered']
    #allocation3 [shape = 's32[1]{0}', space=sflag, size = 0x4, scoped, tag = 'scoped memory for tpu_custom_call.1']
    #allocation4 [shape = 's32[1]{0}', space=sflag, size = 0x4, scoped, tag = 'scoped memory for tpu_custom_call.1']
    #allocation5 [shape = 'u8[524288]{0}', space=vmem, size = 0x80000, scoped, tag = 'output window, operand 0, single buffered']
    %7 = vsyncpa [#allocation3], 0
    %8 = vsyncpa [#allocation4], 0
    // Predicated region
    $region2: #{tpu_custom_call.1} parent=1 // pred_check
      _
    $region3: #{tpu_custom_call.1} parent=1 // pred_check_branch
      %10 = sbr.rel (0) target = $region5
    $region4: #{tpu_custom_call.1} parent=1 // pred_region
      _
    $region5: #{tpu_custom_call.1} parent=1 // pred_fallthru
      _
    // Predicated region
    $region6: #{tpu_custom_call.1} parent=1 // pred_check
      _
    $region7: #{tpu_custom_call.1} parent=1 // pred_check_branch
      %12 = sbr.rel (0) target = $region9
    $region8: #{tpu_custom_call.1} parent=1 // pred_region
      %s14 = ssub.s32 16384, 16384
      %15 = vsyncadd [#allocation3], %s14
      %s16 = sshll.u32 [#allocation2], 4
      %s17 = int_to_ptr.vmem [resolvable:$true] %s16
      %22 = dma.hbm_to_vmem [thread:$0]  %s1, 16384, %s17, [#allocation3], 512, 512, 32
    $region9: #{tpu_custom_call.1} parent=1 // pred_fallthru
      _
    // Predicated region
    $region10: #{tpu_custom_call.1} parent=1 // pred_check
      _
    $region11: #{tpu_custom_call.1} parent=1 // pred_check_branch
      %24 = sbr.rel (0) target = $region13
    $region12: #{tpu_custom_call.1} parent=1 // pred_region
      %25 = dma.done [#allocation3], 16384
    $region13: #{tpu_custom_call.1} parent=1 // pred_fallthru
      _
    %v26 = vld [vmem:[#allocation2] sm:$0xff]
    %v27 = vld [vmem:[#allocation2 + $0x8] sm:$0xff]
    %v28 = vld [vmem:[#allocation2 + $0x10] sm:$0xff]
    %v29 = vld [vmem:[#allocation2 + $0x18] sm:$0xff]
    %v30 = vld [vmem:[#allocation2 + $0x20] sm:$0xff]
    %v31 = vld [vmem:[#allocation2 + $0x28] sm:$0xff]
    %v32 = vld [vmem:[#allocation2 + $0x30] sm:$0xff]
    %v33 = vld [vmem:[#allocation2 + $0x38] sm:$0xff]
    %v34 = vld [vmem:[#allocation2 + $0x40] sm:$0xff]
    %v35 = vld [vmem:[#allocation2 + $0x48] sm:$0xff]
    %v36 = vld [vmem:[#allocation2 + $0x50] sm:$0xff]
    %v37 = vld [vmem:[#allocation2 + $0x58] sm:$0xff]
    %v38 = vld [vmem:[#allocation2 + $0x60] sm:$0xff]
    %v39 = vld [vmem:[#allocation2 + $0x68] sm:$0xff]
    %v40 = vld [vmem:[#allocation2 + $0x70] sm:$0xff]
    %v41 = vld [vmem:[#allocation2 + $0x78] sm:$0xff]
    %v42 = vld [vmem:[#allocation2 + $0x80] sm:$0xff]
    %v43 = vld [vmem:[#allocation2 + $0x88] sm:$0xff]
    %v44 = vld [vmem:[#allocation2 + $0x90] sm:$0xff]
    %v45 = vld [vmem:[#allocation2 + $0x98] sm:$0xff]
    %v46 = vld [vmem:[#allocation2 + $0xa0] sm:$0xff]
    %v47 = vld [vmem:[#allocation2 + $0xa8] sm:$0xff]
    %v48 = vld [vmem:[#allocation2 + $0xb0] sm:$0xff]
    %v49 = vld [vmem:[#allocation2 + $0xb8] sm:$0xff]
    %v50 = vld [vmem:[#allocation2 + $0xc0] sm:$0xff]
    %v51 = vld [vmem:[#allocation2 + $0xc8] sm:$0xff]
    %v52 = vld [vmem:[#allocation2 + $0xd0] sm:$0xff]
    %v53 = vld [vmem:[#allocation2 + $0xd8] sm:$0xff]
    %v54 = vld [vmem:[#allocation2 + $0xe0] sm:$0xff]
    %v55 = vld [vmem:[#allocation2 + $0xe8] sm:$0xff]
    %v56 = vld [vmem:[#allocation2 + $0xf0] sm:$0xff]
    %v57 = vld [vmem:[#allocation2 + $0xf8] sm:$0xff]
    %v58 = vld [vmem:[#allocation2 + $0x100] sm:$0xff]
    %v59 = vld [vmem:[#allocation2 + $0x108] sm:$0xff]
    %v60 = vld [vmem:[#allocation2 + $0x110] sm:$0xff]
    %v61 = vld [vmem:[#allocation2 + $0x118] sm:$0xff]
    %v62 = vld [vmem:[#allocation2 + $0x120] sm:$0xff]
    %v63 = vld [vmem:[#allocation2 + $0x128] sm:$0xff]
    %v64 = vld [vmem:[#allocation2 + $0x130] sm:$0xff]
    %v65 = vld [vmem:[#allocation2 + $0x138] sm:$0xff]
    %v66 = vld [vmem:[#allocation2 + $0x140] sm:$0xff]
    %v67 = vld [vmem:[#allocation2 + $0x148] sm:$0xff]
    %v68 = vld [vmem:[#allocation2 + $0x150] sm:$0xff]
    %v69 = vld [vmem:[#allocation2 + $0x158] sm:$0xff]
    %v70 = vld [vmem:[#allocation2 + $0x160] sm:$0xff]
    %v71 = vld [vmem:[#allocation2 + $0x168] sm:$0xff]
    %v72 = vld [vmem:[#allocation2 + $0x170] sm:$0xff]
    %v73 = vld [vmem:[#allocation2 + $0x178] sm:$0xff]
    %v74 = vld [vmem:[#allocation2 + $0x180] sm:$0xff]
    %v75 = vld [vmem:[#allocation2 + $0x188] sm:$0xff]
    %v76 = vld [vmem:[#allocation2 + $0x190] sm:$0xff]
    %v77 = vld [vmem:[#allocation2 + $0x198] sm:$0xff]
    %v78 = vld [vmem:[#allocation2 + $0x1a0] sm:$0xff]
    %v79 = vld [vmem:[#allocation2 + $0x1a8] sm:$0xff]
    %v80 = vld [vmem:[#allocation2 + $0x1b0] sm:$0xff]
    %v81 = vld [vmem:[#allocation2 + $0x1b8] sm:$0xff]
    %v82 = vld [vmem:[#allocation2 + $0x1c0] sm:$0xff]
    %v83 = vld [vmem:[#allocation2 + $0x1c8] sm:$0xff]
    %v84 = vld [vmem:[#allocation2 + $0x1d0] sm:$0xff]
    %v85 = vld [vmem:[#allocation2 + $0x1d8] sm:$0xff]
    %v86 = vld [vmem:[#allocation2 + $0x1e0] sm:$0xff]
    %v87 = vld [vmem:[#allocation2 + $0x1e8] sm:$0xff]
    %v88 = vld [vmem:[#allocation2 + $0x1f0] sm:$0xff]
    %v89 = vld [vmem:[#allocation2 + $0x1f8] sm:$0xff]
    %v90 = vld [vmem:[#allocation2 + $0x200] sm:$0xff]
    %v91 = vld [vmem:[#allocation2 + $0x208] sm:$0xff]
    %v92 = vld [vmem:[#allocation2 + $0x210] sm:$0xff]
    %v93 = vld [vmem:[#allocation2 + $0x218] sm:$0xff]
    %v94 = vld [vmem:[#allocation2 + $0x220] sm:$0xff]
    %v95 = vld [vmem:[#allocation2 + $0x228] sm:$0xff]
    %v96 = vld [vmem:[#allocation2 + $0x230] sm:$0xff]
    %v97 = vld [vmem:[#allocation2 + $0x238] sm:$0xff]
    %v98 = vld [vmem:[#allocation2 + $0x240] sm:$0xff]
    %v99 = vld [vmem:[#allocation2 + $0x248] sm:$0xff]
    %v100 = vld [vmem:[#allocation2 + $0x250] sm:$0xff]
    %v101 = vld [vmem:[#allocation2 + $0x258] sm:$0xff]
    %v102 = vld [vmem:[#allocation2 + $0x260] sm:$0xff]
    %v103 = vld [vmem:[#allocation2 + $0x268] sm:$0xff]
    %v104 = vld [vmem:[#allocation2 + $0x270] sm:$0xff]
    %v105 = vld [vmem:[#allocation2 + $0x278] sm:$0xff]
    %v106 = vld [vmem:[#allocation2 + $0x280] sm:$0xff]
    %v107 = vld [vmem:[#allocation2 + $0x288] sm:$0xff]
    %v108 = vld [vmem:[#allocation2 + $0x290] sm:$0xff]
    %v109 = vld [vmem:[#allocation2 + $0x298] sm:$0xff]
    %v110 = vld [vmem:[#allocation2 + $0x2a0] sm:$0xff]
    %v111 = vld [vmem:[#allocation2 + $0x2a8] sm:$0xff]
    %v112 = vld [vmem:[#allocation2 + $0x2b0] sm:$0xff]
    %v113 = vld [vmem:[#allocation2 + $0x2b8] sm:$0xff]
    %v114 = vld [vmem:[#allocation2 + $0x2c0] sm:$0xff]
    %v115 = vld [vmem:[#allocation2 + $0x2c8] sm:$0xff]
    %v116 = vld [vmem:[#allocation2 + $0x2d0] sm:$0xff]
    %v117 = vld [vmem:[#allocation2 + $0x2d8] sm:$0xff]
    %v118 = vld [vmem:[#allocation2 + $0x2e0] sm:$0xff]
    %v119 = vld [vmem:[#allocation2 + $0x2e8] sm:$0xff]
    %v120 = vld [vmem:[#allocation2 + $0x2f0] sm:$0xff]
    %v121 = vld [vmem:[#allocation2 + $0x2f8] sm:$0xff]
    %v122 = vld [vmem:[#allocation2 + $0x300] sm:$0xff]
    %v123 = vld [vmem:[#allocation2 + $0x308] sm:$0xff]
    %v124 = vld [vmem:[#allocation2 + $0x310] sm:$0xff]
    %v125 = vld [vmem:[#allocation2 + $0x318] sm:$0xff]
    %v126 = vld [vmem:[#allocation2 + $0x320] sm:$0xff]
    %v127 = vld [vmem:[#allocation2 + $0x328] sm:$0xff]
    %v128 = vld [vmem:[#allocation2 + $0x330] sm:$0xff]
    %v129 = vld [vmem:[#allocation2 + $0x338] sm:$0xff]
    %v130 = vld [vmem:[#allocation2 + $0x340] sm:$0xff]
    %v131 = vld [vmem:[#allocation2 + $0x348] sm:$0xff]
    %v132 = vld [vmem:[#allocation2 + $0x350] sm:$0xff]
    %v133 = vld [vmem:[#allocation2 + $0x358] sm:$0xff]
    %v134 = vld [vmem:[#allocation2 + $0x360] sm:$0xff]
    %v135 = vld [vmem:[#allocation2 + $0x368] sm:$0xff]
    %v136 = vld [vmem:[#allocation2 + $0x370] sm:$0xff]
    %v137 = vld [vmem:[#allocation2 + $0x378] sm:$0xff]
    %v138 = vld [vmem:[#allocation2 + $0x380] sm:$0xff]
    %v139 = vld [vmem:[#allocation2 + $0x388] sm:$0xff]
    %v140 = vld [vmem:[#allocation2 + $0x390] sm:$0xff]
    %v141 = vld [vmem:[#allocation2 + $0x398] sm:$0xff]
    %v142 = vld [vmem:[#allocation2 + $0x3a0] sm:$0xff]
    %v143 = vld [vmem:[#allocation2 + $0x3a8] sm:$0xff]
    %v144 = vld [vmem:[#allocation2 + $0x3b0] sm:$0xff]
    %v145 = vld [vmem:[#allocation2 + $0x3b8] sm:$0xff]
    %v146 = vld [vmem:[#allocation2 + $0x3c0] sm:$0xff]
    %v147 = vld [vmem:[#allocation2 + $0x3c8] sm:$0xff]
    %v148 = vld [vmem:[#allocation2 + $0x3d0] sm:$0xff]
    %v149 = vld [vmem:[#allocation2 + $0x3d8] sm:$0xff]
    %v150 = vld [vmem:[#allocation2 + $0x3e0] sm:$0xff]
    %v151 = vld [vmem:[#allocation2 + $0x3e8] sm:$0xff]
    %v152 = vld [vmem:[#allocation2 + $0x3f0] sm:$0xff]
    %v153 = vld [vmem:[#allocation2 + $0x3f8] sm:$0xff]
    %v154 = vld [vmem:[%s0] sm:$0xff]
    %v155 = vld [vmem:[%s0 + $0x8] sm:$0xff]
    %v156 = vld [vmem:[%s0 + $0x10] sm:$0xff]
    %v157 = vld [vmem:[%s0 + $0x18] sm:$0xff]
    %v158 = vld [vmem:[%s0 + $0x20] sm:$0xff]
    %v159 = vld [vmem:[%s0 + $0x28] sm:$0xff]
    %v160 = vld [vmem:[%s0 + $0x30] sm:$0xff]
    %v161 = vld [vmem:[%s0 + $0x38] sm:$0xff]
    %v162 = vld [vmem:[%s0 + $0x40] sm:$0xff]
    %v163 = vld [vmem:[%s0 + $0x48] sm:$0xff]
    %v164 = vld [vmem:[%s0 + $0x50] sm:$0xff]
    %v165 = vld [vmem:[%s0 + $0x58] sm:$0xff]
    %v166 = vld [vmem:[%s0 + $0x60] sm:$0xff]
    %v167 = vld [vmem:[%s0 + $0x68] sm:$0xff]
    %v168 = vld [vmem:[%s0 + $0x70] sm:$0xff]
    %v169 = vld [vmem:[%s0 + $0x78] sm:$0xff]
    %v170 = vld [vmem:[%s0 + $0x80] sm:$0xff]
    %v171 = vld [vmem:[%s0 + $0x88] sm:$0xff]
    %v172 = vld [vmem:[%s0 + $0x90] sm:$0xff]
    %v173 = vld [vmem:[%s0 + $0x98] sm:$0xff]
    %v174 = vld [vmem:[%s0 + $0xa0] sm:$0xff]
    %v175 = vld [vmem:[%s0 + $0xa8] sm:$0xff]
    %v176 = vld [vmem:[%s0 + $0xb0] sm:$0xff]
    %v177 = vld [vmem:[%s0 + $0xb8] sm:$0xff]
    %v178 = vld [vmem:[%s0 + $0xc0] sm:$0xff]
    %v179 = vld [vmem:[%s0 + $0xc8] sm:$0xff]
    %v180 = vld [vmem:[%s0 + $0xd0] sm:$0xff]
    %v181 = vld [vmem:[%s0 + $0xd8] sm:$0xff]
    %v182 = vld [vmem:[%s0 + $0xe0] sm:$0xff]
    %v183 = vld [vmem:[%s0 + $0xe8] sm:$0xff]
    %v184 = vld [vmem:[%s0 + $0xf0] sm:$0xff]
    %v185 = vld [vmem:[%s0 + $0xf8] sm:$0xff]
    %187 = vset.pattern.permute.xlu0 0
    %188 = vperm.xlu0 %187, %v154
    %v189 = vpop.permute.xlu0 %188
    %192 = vset.pattern.permute.xlu0 0
    %193 = vperm.xlu0 %192, %v155
    %v194 = vpop.permute.xlu0 %193
    %197 = vset.pattern.permute.xlu0 0
    %198 = vperm.xlu0 %197, %v156
    %v199 = vpop.permute.xlu0 %198
    %202 = vset.pattern.permute.xlu0 0
    %203 = vperm.xlu0 %202, %v157
    %v204 = vpop.permute.xlu0 %203
    %207 = vset.pattern.permute.xlu0 0
    %208 = vperm.xlu0 %207, %v158
    %v209 = vpop.permute.xlu0 %208
    %212 = vset.pattern.permute.xlu0 0
    %213 = vperm.xlu0 %212, %v159
    %v214 = vpop.permute.xlu0 %213
    %217 = vset.pattern.permute.xlu0 0
    %218 = vperm.xlu0 %217, %v160
    %v219 = vpop.permute.xlu0 %218
    %222 = vset.pattern.permute.xlu0 0
    %223 = vperm.xlu0 %222, %v161
    %v224 = vpop.permute.xlu0 %223
    %227 = vset.pattern.permute.xlu0 0
    %228 = vperm.xlu0 %227, %v162
    %v229 = vpop.permute.xlu0 %228
    %232 = vset.pattern.permute.xlu0 0
    %233 = vperm.xlu0 %232, %v163
    %v234 = vpop.permute.xlu0 %233
    %237 = vset.pattern.permute.xlu0 0
    %238 = vperm.xlu0 %237, %v164
    %v239 = vpop.permute.xlu0 %238
    %242 = vset.pattern.permute.xlu0 0
    %243 = vperm.xlu0 %242, %v165
    %v244 = vpop.permute.xlu0 %243
    %247 = vset.pattern.permute.xlu0 0
    %248 = vperm.xlu0 %247, %v166
    %v249 = vpop.permute.xlu0 %248
    %252 = vset.pattern.permute.xlu0 0
    %253 = vperm.xlu0 %252, %v167
    %v254 = vpop.permute.xlu0 %253
    %257 = vset.pattern.permute.xlu0 0
    %258 = vperm.xlu0 %257, %v168
    %v259 = vpop.permute.xlu0 %258
    %262 = vset.pattern.permute.xlu0 0
    %263 = vperm.xlu0 %262, %v169
    %v264 = vpop.permute.xlu0 %263
    %267 = vset.pattern.permute.xlu0 0
    %268 = vperm.xlu0 %267, %v170
    %v269 = vpop.permute.xlu0 %268
    %272 = vset.pattern.permute.xlu0 0
    %273 = vperm.xlu0 %272, %v171
    %v274 = vpop.permute.xlu0 %273
    %277 = vset.pattern.permute.xlu0 0
    %278 = vperm.xlu0 %277, %v172
    %v279 = vpop.permute.xlu0 %278
    %282 = vset.pattern.permute.xlu0 0
    %283 = vperm.xlu0 %282, %v173
    %v284 = vpop.permute.xlu0 %283
    %287 = vset.pattern.permute.xlu0 0
    %288 = vperm.xlu0 %287, %v174
    %v289 = vpop.permute.xlu0 %288
    %292 = vset.pattern.permute.xlu0 0
    %293 = vperm.xlu0 %292, %v175
    %v294 = vpop.permute.xlu0 %293
    %297 = vset.pattern.permute.xlu0 0
    %298 = vperm.xlu0 %297, %v176
    %v299 = vpop.permute.xlu0 %298
    %302 = vset.pattern.permute.xlu0 0
    %303 = vperm.xlu0 %302, %v177
    %v304 = vpop.permute.xlu0 %303
    %307 = vset.pattern.permute.xlu0 0
    %308 = vperm.xlu0 %307, %v178
    %v309 = vpop.permute.xlu0 %308
    %312 = vset.pattern.permute.xlu0 0
    %313 = vperm.xlu0 %312, %v179
    %v314 = vpop.permute.xlu0 %313
    %317 = vset.pattern.permute.xlu0 0
    %318 = vperm.xlu0 %317, %v180
    %v319 = vpop.permute.xlu0 %318
    %322 = vset.pattern.permute.xlu0 0
    %323 = vperm.xlu0 %322, %v181
    %v324 = vpop.permute.xlu0 %323
    %327 = vset.pattern.permute.xlu0 0
    %328 = vperm.xlu0 %327, %v182
    %v329 = vpop.permute.xlu0 %328
    %332 = vset.pattern.permute.xlu0 0
    %333 = vperm.xlu0 %332, %v183
    %v334 = vpop.permute.xlu0 %333
    %337 = vset.pattern.permute.xlu0 0
    %338 = vperm.xlu0 %337, %v184
    %v339 = vpop.permute.xlu0 %338
    %342 = vset.pattern.permute.xlu0 0
    %343 = vperm.xlu0 %342, %v185
    %v344 = vpop.permute.xlu0 %343
    %v346 = vmul.f32 %v26, %v189
    %v347 = vmul.f32 %v27, %v189
    %v348 = vmul.f32 %v28, %v189
    %v349 = vmul.f32 %v29, %v189
    %v350 = vmul.f32 %v30, %v194
    %v351 = vmul.f32 %v31, %v194
    %v352 = vmul.f32 %v32, %v194
    %v353 = vmul.f32 %v33, %v194
    %v354 = vmul.f32 %v34, %v199
    %v355 = vmul.f32 %v35, %v199
    %v356 = vmul.f32 %v36, %v199
    %v357 = vmul.f32 %v37, %v199
    %v358 = vmul.f32 %v38, %v204
    %v359 = vmul.f32 %v39, %v204
    %v360 = vmul.f32 %v40, %v204
    %v361 = vmul.f32 %v41, %v204
    %v362 = vmul.f32 %v42, %v209
    %v363 = vmul.f32 %v43, %v209
    %v364 = vmul.f32 %v44, %v209
    %v365 = vmul.f32 %v45, %v209
    %v366 = vmul.f32 %v46, %v214
    %v367 = vmul.f32 %v47, %v214
    %v368 = vmul.f32 %v48, %v214
    %v369 = vmul.f32 %v49, %v214
    %v370 = vmul.f32 %v50, %v219
    %v371 = vmul.f32 %v51, %v219
    %v372 = vmul.f32 %v52, %v219
    %v373 = vmul.f32 %v53, %v219
    %v374 = vmul.f32 %v54, %v224
    %v375 = vmul.f32 %v55, %v224
    %v376 = vmul.f32 %v56, %v224
    %v377 = vmul.f32 %v57, %v224
    %v378 = vmul.f32 %v58, %v229
    %v379 = vmul.f32 %v59, %v229
    %v380 = vmul.f32 %v60, %v229
    %v381 = vmul.f32 %v61, %v229
    %v382 = vmul.f32 %v62, %v234
    %v383 = vmul.f32 %v63, %v234
    %v384 = vmul.f32 %v64, %v234
    %v385 = vmul.f32 %v65, %v234
    %v386 = vmul.f32 %v66, %v239
    %v387 = vmul.f32 %v67, %v239
    %v388 = vmul.f32 %v68, %v239
    %v389 = vmul.f32 %v69, %v239
    %v390 = vmul.f32 %v70, %v244
    %v391 = vmul.f32 %v71, %v244
    %v392 = vmul.f32 %v72, %v244
    %v393 = vmul.f32 %v73, %v244
    %v394 = vmul.f32 %v74, %v249
    %v395 = vmul.f32 %v75, %v249
    %v396 = vmul.f32 %v76, %v249
    %v397 = vmul.f32 %v77, %v249
    %v398 = vmul.f32 %v78, %v254
    %v399 = vmul.f32 %v79, %v254
    %v400 = vmul.f32 %v80, %v254
    %v401 = vmul.f32 %v81, %v254
    %v402 = vmul.f32 %v82, %v259
    %v403 = vmul.f32 %v83, %v259
    %v404 = vmul.f32 %v84, %v259
    %v405 = vmul.f32 %v85, %v259
    %v406 = vmul.f32 %v86, %v264
    %v407 = vmul.f32 %v87, %v264
    %v408 = vmul.f32 %v88, %v264
    %v409 = vmul.f32 %v89, %v264
    %v410 = vmul.f32 %v90, %v269
    %v411 = vmul.f32 %v91, %v269
    %v412 = vmul.f32 %v92, %v269
    %v413 = vmul.f32 %v93, %v269
    %v414 = vmul.f32 %v94, %v274
    %v415 = vmul.f32 %v95, %v274
    %v416 = vmul.f32 %v96, %v274
    %v417 = vmul.f32 %v97, %v274
    %v418 = vmul.f32 %v98, %v279
    %v419 = vmul.f32 %v99, %v279
    %v420 = vmul.f32 %v100, %v279
    %v421 = vmul.f32 %v101, %v279
    %v422 = vmul.f32 %v102, %v284
    %v423 = vmul.f32 %v103, %v284
    %v424 = vmul.f32 %v104, %v284
    %v425 = vmul.f32 %v105, %v284
    %v426 = vmul.f32 %v106, %v289
    %v427 = vmul.f32 %v107, %v289
    %v428 = vmul.f32 %v108, %v289
    %v429 = vmul.f32 %v109, %v289
    %v430 = vmul.f32 %v110, %v294
    %v431 = vmul.f32 %v111, %v294
    %v432 = vmul.f32 %v112, %v294
    %v433 = vmul.f32 %v113, %v294
    %v434 = vmul.f32 %v114, %v299
    %v435 = vmul.f32 %v115, %v299
    %v436 = vmul.f32 %v116, %v299
    %v437 = vmul.f32 %v117, %v299
    %v438 = vmul.f32 %v118, %v304
    %v439 = vmul.f32 %v119, %v304
    %v440 = vmul.f32 %v120, %v304
    %v441 = vmul.f32 %v121, %v304
    %v442 = vmul.f32 %v122, %v309
    %v443 = vmul.f32 %v123, %v309
    %v444 = vmul.f32 %v124, %v309
    %v445 = vmul.f32 %v125, %v309
    %v446 = vmul.f32 %v126, %v314
    %v447 = vmul.f32 %v127, %v314
    %v448 = vmul.f32 %v128, %v314
    %v449 = vmul.f32 %v129, %v314
    %v450 = vmul.f32 %v130, %v319
    %v451 = vmul.f32 %v131, %v319
    %v452 = vmul.f32 %v132, %v319
    %v453 = vmul.f32 %v133, %v319
    %v454 = vmul.f32 %v134, %v324
    %v455 = vmul.f32 %v135, %v324
    %v456 = vmul.f32 %v136, %v324
    %v457 = vmul.f32 %v137, %v324
    %v458 = vmul.f32 %v138, %v329
    %v459 = vmul.f32 %v139, %v329
    %v460 = vmul.f32 %v140, %v329
    %v461 = vmul.f32 %v141, %v329
    %v462 = vmul.f32 %v142, %v334
    %v463 = vmul.f32 %v143, %v334
    %v464 = vmul.f32 %v144, %v334
    %v465 = vmul.f32 %v145, %v334
    %v466 = vmul.f32 %v146, %v339
    %v467 = vmul.f32 %v147, %v339
    %v468 = vmul.f32 %v148, %v339
    %v469 = vmul.f32 %v149, %v339
    %v470 = vmul.f32 %v150, %v344
    %v471 = vmul.f32 %v151, %v344
    %v472 = vmul.f32 %v152, %v344
    %v473 = vmul.f32 %v153, %v344
    %474 = vst [vmem:[#allocation5] sm:$0xff] %v346
    %475 = vst [vmem:[#allocation5 + $0x8] sm:$0xff] %v347
    %476 = vst [vmem:[#allocation5 + $0x10] sm:$0xff] %v348
    %477 = vst [vmem:[#allocation5 + $0x18] sm:$0xff] %v349
    %478 = vst [vmem:[#allocation5 + $0x20] sm:$0xff] %v350
    %479 = vst [vmem:[#allocation5 + $0x28] sm:$0xff] %v351
    %480 = vst [vmem:[#allocation5 + $0x30] sm:$0xff] %v352
    %481 = vst [vmem:[#allocation5 + $0x38] sm:$0xff] %v353
    %482 = vst [vmem:[#allocation5 + $0x40] sm:$0xff] %v354
    %483 = vst [vmem:[#allocation5 + $0x48] sm:$0xff] %v355
    %484 = vst [vmem:[#allocation5 + $0x50] sm:$0xff] %v356
    %485 = vst [vmem:[#allocation5 + $0x58] sm:$0xff] %v357
    %486 = vst [vmem:[#allocation5 + $0x60] sm:$0xff] %v358
    %487 = vst [vmem:[#allocation5 + $0x68] sm:$0xff] %v359
    %488 = vst [vmem:[#allocation5 + $0x70] sm:$0xff] %v360
    %489 = vst [vmem:[#allocation5 + $0x78] sm:$0xff] %v361
    %490 = vst [vmem:[#allocation5 + $0x80] sm:$0xff] %v362
    %491 = vst [vmem:[#allocation5 + $0x88] sm:$0xff] %v363
    %492 = vst [vmem:[#allocation5 + $0x90] sm:$0xff] %v364
    %493 = vst [vmem:[#allocation5 + $0x98] sm:$0xff] %v365
    %494 = vst [vmem:[#allocation5 + $0xa0] sm:$0xff] %v366
    %495 = vst [vmem:[#allocation5 + $0xa8] sm:$0xff] %v367
    %496 = vst [vmem:[#allocation5 + $0xb0] sm:$0xff] %v368
    %497 = vst [vmem:[#allocation5 + $0xb8] sm:$0xff] %v369
    %498 = vst [vmem:[#allocation5 + $0xc0] sm:$0xff] %v370
    %499 = vst [vmem:[#allocation5 + $0xc8] sm:$0xff] %v371
    %500 = vst [vmem:[#allocation5 + $0xd0] sm:$0xff] %v372
    %501 = vst [vmem:[#allocation5 + $0xd8] sm:$0xff] %v373
    %502 = vst [vmem:[#allocation5 + $0xe0] sm:$0xff] %v374
    %503 = vst [vmem:[#allocation5 + $0xe8] sm:$0xff] %v375
    %504 = vst [vmem:[#allocation5 + $0xf0] sm:$0xff] %v376
    %505 = vst [vmem:[#allocation5 + $0xf8] sm:$0xff] %v377
    %506 = vst [vmem:[#allocation5 + $0x100] sm:$0xff] %v378
    %507 = vst [vmem:[#allocation5 + $0x108] sm:$0xff] %v379
    %508 = vst [vmem:[#allocation5 + $0x110] sm:$0xff] %v380
    %509 = vst [vmem:[#allocation5 + $0x118] sm:$0xff] %v381
    %510 = vst [vmem:[#allocation5 + $0x120] sm:$0xff] %v382
    %511 = vst [vmem:[#allocation5 + $0x128] sm:$0xff] %v383
    %512 = vst [vmem:[#allocation5 + $0x130] sm:$0xff] %v384
    %513 = vst [vmem:[#allocation5 + $0x138] sm:$0xff] %v385
    %514 = vst [vmem:[#allocation5 + $0x140] sm:$0xff] %v386
    %515 = vst [vmem:[#allocation5 + $0x148] sm:$0xff] %v387
    %516 = vst [vmem:[#allocation5 + $0x150] sm:$0xff] %v388
    %517 = vst [vmem:[#allocation5 + $0x158] sm:$0xff] %v389
    %518 = vst [vmem:[#allocation5 + $0x160] sm:$0xff] %v390
    %519 = vst [vmem:[#allocation5 + $0x168] sm:$0xff] %v391
    %520 = vst [vmem:[#allocation5 + $0x170] sm:$0xff] %v392
    %521 = vst [vmem:[#allocation5 + $0x178] sm:$0xff] %v393
    %522 = vst [vmem:[#allocation5 + $0x180] sm:$0xff] %v394
    %523 = vst [vmem:[#allocation5 + $0x188] sm:$0xff] %v395
    %524 = vst [vmem:[#allocation5 + $0x190] sm:$0xff] %v396
    %525 = vst [vmem:[#allocation5 + $0x198] sm:$0xff] %v397
    %526 = vst [vmem:[#allocation5 + $0x1a0] sm:$0xff] %v398
    %527 = vst [vmem:[#allocation5 + $0x1a8] sm:$0xff] %v399
    %528 = vst [vmem:[#allocation5 + $0x1b0] sm:$0xff] %v400
    %529 = vst [vmem:[#allocation5 + $0x1b8] sm:$0xff] %v401
    %530 = vst [vmem:[#allocation5 + $0x1c0] sm:$0xff] %v402
    %531 = vst [vmem:[#allocation5 + $0x1c8] sm:$0xff] %v403
    %532 = vst [vmem:[#allocation5 + $0x1d0] sm:$0xff] %v404
    %533 = vst [vmem:[#allocation5 + $0x1d8] sm:$0xff] %v405
    %534 = vst [vmem:[#allocation5 + $0x1e0] sm:$0xff] %v406
    %535 = vst [vmem:[#allocation5 + $0x1e8] sm:$0xff] %v407
    %536 = vst [vmem:[#allocation5 + $0x1f0] sm:$0xff] %v408
    %537 = vst [vmem:[#allocation5 + $0x1f8] sm:$0xff] %v409
    %538 = vst [vmem:[#allocation5 + $0x200] sm:$0xff] %v410
    %539 = vst [vmem:[#allocation5 + $0x208] sm:$0xff] %v411
    %540 = vst [vmem:[#allocation5 + $0x210] sm:$0xff] %v412
    %541 = vst [vmem:[#allocation5 + $0x218] sm:$0xff] %v413
    %542 = vst [vmem:[#allocation5 + $0x220] sm:$0xff] %v414
    %543 = vst [vmem:[#allocation5 + $0x228] sm:$0xff] %v415
    %544 = vst [vmem:[#allocation5 + $0x230] sm:$0xff] %v416
    %545 = vst [vmem:[#allocation5 + $0x238] sm:$0xff] %v417
    %546 = vst [vmem:[#allocation5 + $0x240] sm:$0xff] %v418
    %547 = vst [vmem:[#allocation5 + $0x248] sm:$0xff] %v419
    %548 = vst [vmem:[#allocation5 + $0x250] sm:$0xff] %v420
    %549 = vst [vmem:[#allocation5 + $0x258] sm:$0xff] %v421
    %550 = vst [vmem:[#allocation5 + $0x260] sm:$0xff] %v422
    %551 = vst [vmem:[#allocation5 + $0x268] sm:$0xff] %v423
    %552 = vst [vmem:[#allocation5 + $0x270] sm:$0xff] %v424
    %553 = vst [vmem:[#allocation5 + $0x278] sm:$0xff] %v425
    %554 = vst [vmem:[#allocation5 + $0x280] sm:$0xff] %v426
    %555 = vst [vmem:[#allocation5 + $0x288] sm:$0xff] %v427
    %556 = vst [vmem:[#allocation5 + $0x290] sm:$0xff] %v428
    %557 = vst [vmem:[#allocation5 + $0x298] sm:$0xff] %v429
    %558 = vst [vmem:[#allocation5 + $0x2a0] sm:$0xff] %v430
    %559 = vst [vmem:[#allocation5 + $0x2a8] sm:$0xff] %v431
    %560 = vst [vmem:[#allocation5 + $0x2b0] sm:$0xff] %v432
    %561 = vst [vmem:[#allocation5 + $0x2b8] sm:$0xff] %v433
    %562 = vst [vmem:[#allocation5 + $0x2c0] sm:$0xff] %v434
    %563 = vst [vmem:[#allocation5 + $0x2c8] sm:$0xff] %v435
    %564 = vst [vmem:[#allocation5 + $0x2d0] sm:$0xff] %v436
    %565 = vst [vmem:[#allocation5 + $0x2d8] sm:$0xff] %v437
    %566 = vst [vmem:[#allocation5 + $0x2e0] sm:$0xff] %v438
    %567 = vst [vmem:[#allocation5 + $0x2e8] sm:$0xff] %v439
    %568 = vst [vmem:[#allocation5 + $0x2f0] sm:$0xff] %v440
    %569 = vst [vmem:[#allocation5 + $0x2f8] sm:$0xff] %v441
    %570 = vst [vmem:[#allocation5 + $0x300] sm:$0xff] %v442
    %571 = vst [vmem:[#allocation5 + $0x308] sm:$0xff] %v443
    %572 = vst [vmem:[#allocation5 + $0x310] sm:$0xff] %v444
    %573 = vst [vmem:[#allocation5 + $0x318] sm:$0xff] %v445
    %574 = vst [vmem:[#allocation5 + $0x320] sm:$0xff] %v446
    %575 = vst [vmem:[#allocation5 + $0x328] sm:$0xff] %v447
    %576 = vst [vmem:[#allocation5 + $0x330] sm:$0xff] %v448
    %577 = vst [vmem:[#allocation5 + $0x338] sm:$0xff] %v449
    %578 = vst [vmem:[#allocation5 + $0x340] sm:$0xff] %v450
    %579 = vst [vmem:[#allocation5 + $0x348] sm:$0xff] %v451
    %580 = vst [vmem:[#allocation5 + $0x350] sm:$0xff] %v452
    %581 = vst [vmem:[#allocation5 + $0x358] sm:$0xff] %v453
    %582 = vst [vmem:[#allocation5 + $0x360] sm:$0xff] %v454
    %583 = vst [vmem:[#allocation5 + $0x368] sm:$0xff] %v455
    %584 = vst [vmem:[#allocation5 + $0x370] sm:$0xff] %v456
    %585 = vst [vmem:[#allocation5 + $0x378] sm:$0xff] %v457
    %586 = vst [vmem:[#allocation5 + $0x380] sm:$0xff] %v458
    %587 = vst [vmem:[#allocation5 + $0x388] sm:$0xff] %v459
    %588 = vst [vmem:[#allocation5 + $0x390] sm:$0xff] %v460
    %589 = vst [vmem:[#allocation5 + $0x398] sm:$0xff] %v461
    %590 = vst [vmem:[#allocation5 + $0x3a0] sm:$0xff] %v462
    %591 = vst [vmem:[#allocation5 + $0x3a8] sm:$0xff] %v463
    %592 = vst [vmem:[#allocation5 + $0x3b0] sm:$0xff] %v464
    %593 = vst [vmem:[#allocation5 + $0x3b8] sm:$0xff] %v465
    %594 = vst [vmem:[#allocation5 + $0x3c0] sm:$0xff] %v466
    %595 = vst [vmem:[#allocation5 + $0x3c8] sm:$0xff] %v467
    %596 = vst [vmem:[#allocation5 + $0x3d0] sm:$0xff] %v468
    %597 = vst [vmem:[#allocation5 + $0x3d8] sm:$0xff] %v469
    %598 = vst [vmem:[#allocation5 + $0x3e0] sm:$0xff] %v470
    %599 = vst [vmem:[#allocation5 + $0x3e8] sm:$0xff] %v471
    %600 = vst [vmem:[#allocation5 + $0x3f0] sm:$0xff] %v472
    %601 = vst [vmem:[#allocation5 + $0x3f8] sm:$0xff] %v473
    // Predicated region
    $region14: #{tpu_custom_call.1} parent=1 // pred_check
      _
    $region15: #{tpu_custom_call.1} parent=1 // pred_check_branch
      %603 = sbr.rel (0) target = $region17
    $region16: #{tpu_custom_call.1} parent=1 // pred_region
      %s605 = ssub.s32 16384, 16384
      %606 = vsyncadd [#allocation4], %s605
      %s607 = sshll.u32 [#allocation5], 4
      %s608 = int_to_ptr.vmem [resolvable:$true] %s607
      %613 = dma.vmem_to_hbm [thread:$0]  %s608, 16384, %s2, [#allocation4], 512, 512, 32
    $region17: #{tpu_custom_call.1} parent=1 // pred_fallthru
      _
    // Predicated region
    $region18: #{tpu_custom_call.1} parent=1 // pred_check
      _
    $region19: #{tpu_custom_call.1} parent=1 // pred_check_branch
      %615 = sbr.rel (0) target = $region21
    $region20: #{tpu_custom_call.1} parent=1 // pred_region
      %616 = dma.done [#allocation4], 16384
    $region21: #{tpu_custom_call.1} parent=1 // pred_fallthru
      _
    %617 = vsyncpa [#allocation3], 1
    %618 = vsyncpa [#allocation4], 1

</llo_original>
